<compile_context>
chip_gen: v6e
topology: v6e:2x2x1
jax: 0.10.0
libtpu: 0.0.40
codegen_flags: <defaults>
</compile_context>

<pallas_src>
import math

import jax
import jax.numpy as jnp
from jax.experimental import pallas as pl
from jax.experimental.pallas import tpu as pltpu


def _make_sum_pool_kernel(bm, bt, cf, tf, nt_per_s, need_mask):
    """Build the kernel: accumulate the time-sum of (bm, bt, cf) tiles."""

    def kernel(x_ref, o_ref):
        # o_ref: (bm, cf) f32 accumulator, resident across the time (last) grid axis.
        @pl.when(pl.program_id(2) == 0)
        def _init():
            o_ref[...] = jnp.zeros_like(o_ref)

        def accum(vals):
            # widening fuses into the reduce -> no full-tile f32 copy for bf16/int8
            o_ref[...] += jnp.sum(vals, axis=1, dtype=jnp.float32)

        if need_mask:
            # absolute time-block index (leading grid axis may split T in two halves)
            tb = pl.program_id(0) * nt_per_s + pl.program_id(2)
            limit = tf - tb * bt          # valid rows in this tile (may be <= 0)

            @pl.when(limit >= bt)         # full tile: plain sublane reduce
            def _full():
                accum(x_ref[...])

            @pl.when(limit < bt)          # ragged / duplicated tail tile: mask rows
            def _tail():
                row = jax.lax.broadcasted_iota(jnp.int32, (bm, bt, cf), 1)
                accum(jnp.where(row < limit, x_ref[...], 0))
        else:
            accum(x_ref[...])

    return kernel


def global_sum_pooling(x, *, target_block_bytes=8 * 1024 * 1024):
    """x: (B, T, C) -> (B, C) global sum over the time axis."""
    B, T, C = x.shape
    in_dtype = x.dtype
    itemsize = jnp.dtype(in_dtype).itemsize

    # ---- lane-densify channels only when the reshape is free (no HBM copy) ----
    k = 128 // math.gcd(C, 128)
    if k > 1 and T % k == 0:
        tf, cf = T // k, k * C
        xf = x.reshape(B, tf, cf)         # contiguous merge of adjacent dims: free
    else:
        # TODO(synk): C % 128 != 0 and T % k != 0 -> lane-sparse tiles (still
        # correct; avoiding any pad/slice HBM round-trip is the bigger win here).
        k, tf, cf = 1, T, C
        xf = x

    # ---- batch tiling (parallel axis), no input padding ------------------------
    bm = B if B <= 8 else 8
    nb = pl.cdiv(B, bm)
    b_ceil = nb * bm                      # output rows >= B are sliced off below

    # ---- time tiling (reduction axis) ------------------------------------------
    lane_cf = ((cf + 127) // 128) * 128   # VMEM lane footprint per time row
    sub_mult = max(8, 32 // itemsize)     # sublane packing: f32 8, bf16 16, i8 32
    bt_budget = max(1, target_block_bytes // (bm * lane_cf * itemsize))
    if tf <= bt_budget:
        bt = tf
    else:
        bt = max(sub_mult, (bt_budget // sub_mult) * sub_mult)
        bt = min(bt, tf)
    nt = pl.cdiv(tf, bt)

    # ---- keep both v7x TensorCores busy when batch gives only one block --------
    s_blocks = 2 if (nb < 2 and nt >= 2) else 1
    nt_per_s = pl.cdiv(nt, s_blocks)
    need_mask = (s_blocks * nt_per_s * bt != tf)

    grid = (s_blocks, nb, nt_per_s)

    def in_index_map(s, i, t):
        # Clamp so a duplicated tail block (odd nt with a 2-way split) stays in
        # bounds; its contribution is zeroed by the in-kernel mask (limit <= 0).
        return (i, jnp.minimum(s * nt_per_s + t, nt - 1), 0)

    cost = pl.CostEstimate(
        flops=B * T * C,                  # one add per input element
        transcendentals=0,
        bytes_accessed=B * T * C * itemsize + s_blocks * b_ceil * cf * 4,
    )

    out = pl.pallas_call(
        _make_sum_pool_kernel(bm, bt, cf, tf, nt_per_s, need_mask),
        out_shape=jax.ShapeDtypeStruct((s_blocks, b_ceil, cf), jnp.float32),
        grid_spec=pltpu.PrefetchScalarGridSpec(
            num_scalar_prefetch=0,
            grid=grid,
            in_specs=[pl.BlockSpec((bm, bt, cf), in_index_map)],
            out_specs=pl.BlockSpec((None, bm, cf), lambda s, i, t: (s, i, 0)),
        ),
        compiler_params=pltpu.CompilerParams(
            dimension_semantics=("parallel", "parallel", "arbitrary"),
            vmem_limit_bytes=32 * 1024 * 1024,
        ),
        cost_estimate=cost,
    )(xf)

    res = out[0] if s_blocks == 1 else out[0] + out[1]
    res = res[:B]
    if k > 1:
        # finish the tiny k-way lane fold: (B, k*C) -> (B, k, C) -> sum over k
        res = res.reshape(B, k, C).sum(axis=1)
    return res.astype(in_dtype)


def _reference(x):
    # Mirrors the PyTorch forward: step_counter (= T) * mean over seq.
    step_counter = jnp.sum(jnp.ones_like(x), axis=1)   # (B, C) == T
    average = jnp.mean(x, axis=1)                      # (B, C)
    return step_counter * average


if __name__ == "__main__":
    key = jax.random.PRNGKey(0)
    keys = jax.random.split(key, 6)

    # Primary small test consistent with the module: (batch=2, seq=8, channels=32)
    x = jax.random.normal(keys[0], (2, 8, 32), dtype=jnp.float32)
    out = jax.block_until_ready(global_sum_pooling(x))
    assert out.shape == (2, 32), out.shape
    assert jnp.allclose(out, _reference(x), atol=1e-5, rtol=1e-5)

    # Multi-step reduction + 2-way time split (S=2) + ragged tail mask +
    # duplicated-clamped tail block (nt=3 odd).
    x2 = jax.random.normal(keys[1], (4, 96, 32), dtype=jnp.float32)
    out2 = jax.block_until_ready(global_sum_pooling(x2, target_block_bytes=8 * 1024))
    assert jnp.allclose(out2, _reference(x2), atol=1e-4, rtol=1e-5)

    # Lane-sparse fallback (C=48, T not a multiple of k=8) - no pad, no copy.
    x3 = jax.random.normal(keys[2], (2, 6, 48), dtype=jnp.float32)
    out3 = jax.block_until_ready(global_sum_pooling(x3))
    assert jnp.allclose(out3, _reference(x3), atol=1e-5, rtol=1e-5)

    # Batch-tail path: B=10 -> bm=8, partial last batch block, no input padding.
    x4 = jax.random.normal(keys[3], (10, 16, 32), dtype=jnp.float32)
    out4 = jax.block_until_ready(global_sum_pooling(x4))
    assert jnp.allclose(out4, _reference(x4), atol=1e-5, rtol=1e-5)

    # bf16 input: bt aligned to 16-row packing, f32 accumulation inside the reduce.
    x5 = jax.random.normal(keys[4], (2, 256, 32), dtype=jnp.float32).astype(jnp.bfloat16)
    out5 = jax.block_until_ready(global_sum_pooling(x5, target_block_bytes=2 * 1024))
    ref5 = jnp.sum(x5.astype(jnp.float32), axis=1)
    assert jnp.allclose(out5.astype(jnp.float32), ref5, atol=1e-1, rtol=2e-2)

    print("KERNEL_OK")
</pallas_src>

<mosaic_0001>
module attributes {stable_mosaic.version = 11 : i64} {
  func.func @kernel(%arg0: i32, %arg1: i32, %arg2: i32, %arg3: memref<2x2x128xf32, #tpu.memory_space<vmem>>, %arg4: memref<1x2x128xf32, #tpu.memory_space<vmem>>) attributes {dimension_semantics = [#tpu.dimension_semantics<parallel>, #tpu.dimension_semantics<parallel>, #tpu.dimension_semantics<arbitrary>], iteration_bounds = array<i64: 1, 1, 1>, scalar_prefetch = 0 : i64, scratch_operands = 0 : i64, tpu.core_type = #tpu.core_type<tc>, window_params = [{transform_indices = @transform_0, window_bounds = array<i64: 2, 2, 128>}, {transform_indices = @transform_1, window_bounds = array<i64: 1, 2, 128>}]} {
    %c0_i32 = arith.constant 0 : i32
    %0 = arith.cmpi eq, %arg2, %c0_i32 : i32
    %1 = arith.extui %0 : i1 to i32
    %c0_i32_0 = arith.constant 0 : i32
    %2 = arith.cmpi ne, %1, %c0_i32_0 : i32
    scf.if %2 {
      %cst_9 = arith.constant 0.000000e+00 : f32
      %11 = vector.broadcast %cst_9 : f32 to vector<2x128xf32>
      %c0_10 = arith.constant 0 : index
      %c0_11 = arith.constant 0 : index
      %c0_12 = arith.constant 0 : index
      %12 = vector.load %arg4[%c0_10, %c0_11, %c0_12] : memref<1x2x128xf32, #tpu.memory_space<vmem>>, vector<1x2x128xf32>
      %13 = vector.shape_cast %12 : vector<1x2x128xf32> to vector<2x128xf32>
      %14 = vector.shape_cast %11 : vector<2x128xf32> to vector<1x2x128xf32>
      tpu.vector_store %arg4[%c0_10, %c0_11, %c0_12], %14 {strides = array<i32>} : memref<1x2x128xf32, #tpu.memory_space<vmem>>, vector<1x2x128xf32>,
    } else {
    }
    %c0 = arith.constant 0 : index
    %c0_1 = arith.constant 0 : index
    %c0_2 = arith.constant 0 : index
    %3 = vector.load %arg3[%c0, %c0_1, %c0_2] : memref<2x2x128xf32, #tpu.memory_space<vmem>>, vector<2x2x128xf32>
    %c0_3 = arith.constant 0 : index
    %c0_4 = arith.constant 0 : index
    %c0_5 = arith.constant 0 : index
    %4 = vector.load %arg4[%c0_3, %c0_4, %c0_5] : memref<1x2x128xf32, #tpu.memory_space<vmem>>, vector<1x2x128xf32>
    %5 = vector.shape_cast %4 : vector<1x2x128xf32> to vector<2x128xf32>
    %cst = arith.constant dense<0.000000e+00> : vector<2x128xf32>
    %6 = vector.multi_reduction <add>, %3, %cst [1] : vector<2x2x128xf32> to vector<2x128xf32>
    %7 = arith.addf %5, %6 : vector<2x128xf32>
    %c0_6 = arith.constant 0 : index
    %c0_7 = arith.constant 0 : index
    %c0_8 = arith.constant 0 : index
    %8 = vector.load %arg4[%c0_6, %c0_7, %c0_8] : memref<1x2x128xf32, #tpu.memory_space<vmem>>, vector<1x2x128xf32>
    %9 = vector.shape_cast %8 : vector<1x2x128xf32> to vector<2x128xf32>
    %10 = vector.shape_cast %7 : vector<2x128xf32> to vector<1x2x128xf32>
    tpu.vector_store %arg4[%c0_6, %c0_7, %c0_8], %10 {strides = array<i32>} : memref<1x2x128xf32, #tpu.memory_space<vmem>>, vector<1x2x128xf32>,
    return
  }
  func.func @transform_0(%arg0: i32, %arg1: i32, %arg2: i32) -> (i32, i32, i32) {
    %c1_i32 = arith.constant 1 : i32
    %0 = arith.muli %arg0, %c1_i32 : i32
    %1 = arith.addi %0, %arg2 : i32
    %c0_i32 = arith.constant 0 : i32
    %2 = arith.minsi %1, %c0_i32 : i32
    %c0_i32_0 = arith.constant 0 : i32
    %c0_i32_1 = arith.constant 0 : i32
    return %arg1, %2, %c0_i32_0 : i32, i32, i32
  }
  func.func @transform_1(%arg0: i32, %arg1: i32, %arg2: i32) -> (i32, i32, i32) {
    %c0_i32 = arith.constant 0 : i32
    %c0_i32_0 = arith.constant 0 : i32
    return %arg0, %arg1, %c0_i32 : i32, i32, i32
  }
}

</mosaic_0001>

<llo_original>
// kernel: tpu_custom_call.1
$region0: #{tpu_custom_call.1}
  #allocation0 [shape = 'u32[]', space=smem, size = 0x4, offset = 0x4, fixed_abs, tag = 'smem constant byte address 0x4 - core index']
  #allocation1 [shape = 'u32[144,128]{1,0:T(1,128)}', space=vmem, size = 0x12000, scoped, tag = 'internal scratch']
  %s0 = inlined_call_operand.hbm [shape: f32[2,2,128], index: 0, kind: input, shape index: {}]
  %s1 = inlined_call_operand.hbm [shape: f32[1,2,128], index: 1, kind: output, shape index: {}]
  %s2 = sld [smem:[#allocation0]]
  $region22: #{tpu_custom_call.1} parent=0
    _
  %s4 = ssub.s32 1, %s2
  %s5 = scalar_select 0, %s4, %s2
  $region1: #{tpu_custom_call.1} parent=0
    #allocation2 [shape = 'u8[2048]{0}', space=vmem, size = 0x800, scoped, tag = 'input window, operand 0, single buffered']
    #allocation3 [shape = 's32[1]{0}', space=sflag, size = 0x4, scoped, tag = 'scoped memory for tpu_custom_call.1']
    #allocation4 [shape = 's32[1]{0}', space=sflag, size = 0x4, scoped, tag = 'scoped memory for tpu_custom_call.1']
    #allocation5 [shape = 'u8[1024]{0}', space=vmem, size = 0x400, scoped, tag = 'output window, operand 0, single buffered']
    %6 = vsyncpa [#allocation3], 0
    %7 = vsyncpa [#allocation4], 0
    // Predicated region
    $region2: #{tpu_custom_call.1} parent=1 // pred_check
      _
    $region3: #{tpu_custom_call.1} parent=1 // pred_check_branch
      %9 = sbr.rel (0) target = $region5
    $region4: #{tpu_custom_call.1} parent=1 // pred_region
      %s10 = sadd.s32 0, 0
      %p11 = scmp.lt.s32.totalorder %s10, 0
      %s12 = scalar_select %p11, %s10, 0
      %s14 = ssub.s32 64, 64
      %15 = vsyncadd [#allocation3], %s14
      %s16 = smul.addr %s12, 32
      %s17 = scalar_lea.hbm %s0, %s16
      %s18 = sshll.u32 [#allocation2], 4
      %s19 = int_to_ptr.vmem [resolvable:$true] %s18
      %24 = dma.hbm_to_vmem [thread:$0]  %s17, 64, %s19, [#allocation3], 32, 32, 2
    $region5: #{tpu_custom_call.1} parent=1 // pred_fallthru
      _
    // Predicated region
    $region6: #{tpu_custom_call.1} parent=1 // pred_check
      _
    $region7: #{tpu_custom_call.1} parent=1 // pred_check_branch
      %26 = sbr.rel (0) target = $region9
    $region8: #{tpu_custom_call.1} parent=1 // pred_region
      %27 = dma.done [#allocation3], 64
    $region9: #{tpu_custom_call.1} parent=1 // pred_fallthru
      _
    %s28 = sadd.s32 0, 0
    %p29 = scmp.lt.s32.totalorder %s28, 0
    %s30 = scalar_select %p29, %s28, 0
    %p31 = scmp.eq.s32.totalorder 0, 0
    // Predicated region
    $region10: #{tpu_custom_call.1} parent=1 // pred_check
      %p32 = pneg %p31
    $region11: #{tpu_custom_call.1} parent=1 // pred_check_branch
      %34 = sbr.rel (%p32) target = $region13
    $region12: #{tpu_custom_call.1} parent=1 // pred_region
      %35 = vst [vmem:[#allocation5] sm:$0x3] 0.0
    $region13: #{tpu_custom_call.1} parent=1 // pred_fallthru
      _
    %v36 = vld [vmem:[#allocation2] sm:$0x3]
    %v37 = vld [vmem:[#allocation2 + $0x2] sm:$0x3]
    %v38 = vld [vmem:[#allocation5] sm:$0x3]
    %vm39 = vcmask 1041408
    %v40 = vsel %vm39, %v36, 0.0
    %v41 = vrot.slane %v40, 4
    %v42 = vadd.f32 %v40, %v41
    %v43 = vrot.slane %v42, 2
    %v44 = vadd.f32 %v42, %v43
    %v45 = vrot.slane %v44, 1
    %v46 = vadd.f32 %v44, %v45
    %v47 = vsel %vm39, %v37, 0.0
    %v48 = vrot.slane %v47, 4
    %v49 = vadd.f32 %v47, %v48
    %v50 = vrot.slane %v49, 2
    %v51 = vadd.f32 %v49, %v50
    %v52 = vrot.slane %v51, 1
    %v53 = vadd.f32 %v51, %v52
    %vm56 = vcmask 1041409
    %v57 = vsel %vm56, %v53, %v46
    %v59 = vadd.f32 %v38, %v57
    %60 = vst [vmem:[#allocation5] sm:$0x3] %v59
    // Predicated region
    $region14: #{tpu_custom_call.1} parent=1 // pred_check
      _
    $region15: #{tpu_custom_call.1} parent=1 // pred_check_branch
      %62 = sbr.rel (0) target = $region17
    $region16: #{tpu_custom_call.1} parent=1 // pred_region
      %s64 = ssub.s32 32, 32
      %65 = vsyncadd [#allocation4], %s64
      %s67 = sshll.u32 [#allocation5], 4
      %s68 = int_to_ptr.vmem [resolvable:$true] %s67
      %70 = dma.vmem_to_hbm [thread:$0]  %s68, 32, %s1, [#allocation4]
    $region17: #{tpu_custom_call.1} parent=1 // pred_fallthru
      _
    // Predicated region
    $region18: #{tpu_custom_call.1} parent=1 // pred_check
      _
    $region19: #{tpu_custom_call.1} parent=1 // pred_check_branch
      %72 = sbr.rel (0) target = $region21
    $region20: #{tpu_custom_call.1} parent=1 // pred_region
      %73 = dma.done [#allocation4], 32
    $region21: #{tpu_custom_call.1} parent=1 // pred_fallthru
      _
    %74 = vsyncpa [#allocation3], 1
    %75 = vsyncpa [#allocation4], 1

</llo_original>
